<compile_context>
chip_gen: v7x
topology: tpu7x:2x2x1
jax: 0.10.0
libtpu: 0.0.40
codegen_flags: <defaults>
</compile_context>

<pallas_src>
import jax
import jax.numpy as jnp
from jax.experimental import pallas as pl
from jax.experimental.pallas import tpu as pltpu

LANES = 128
SUBLANES = 8
TARGET_BLOCK_BYTES = 4 << 20   # ~4 MiB per input block (per perf review)
VMEM_LIMIT_BYTES = 32 << 20    # 2 inputs x 2 buffers x 4 MiB = 16 MiB + headroom


def _abs_diff_f32(x, y):
    """|x - y| as f32; for bf16 inputs the subtract/abs stay on the bf16 VPU."""
    if x.dtype == jnp.bfloat16 and y.dtype == jnp.bfloat16:
        return jnp.abs(x - y).astype(jnp.float32)
    return jnp.abs(x.astype(jnp.float32) - y.astype(jnp.float32))


def _apply_power(d, p):
    """d ** p with cheap-power specializations (d >= 0)."""
    p = float(p)
    if p == 1.0:
        return d
    if p == 2.0:
        return d * d
    if p == 0.5:
        return jnp.sqrt(d)
    if p == float(int(p)) and p > 0.0:
        # Exponentiation by squaring: VPU-only for any positive integer p.
        n = int(p)
        result = None
        base = d
        while n:
            if n & 1:
                result = base if result is None else result * base
            n >>= 1
            if n:
                base = base * base
        return result
    return d ** jnp.float32(p)   # general p: EUP exp/log path (fallback only)


def _tensorcores_per_chip():
    """Best-effort TensorCore count a 'parallel' grid axis can shard over."""
    try:
        kind = jax.devices()[0].device_kind.lower().replace(" ", "")
    except Exception:
        return 1
    for tag in ("v7", "7x", "v4", "v5p"):   # dual-TC / megacore chips
        if tag in kind:
            return 2
    return 1


def _make_lp_loss_kernel(p, block_rows, steps_per_split, rows_valid, needs_mask):
    p = float(p)

    def kernel(x_ref, y_ref, o_ref, acc_ref):
        s = pl.program_id(0)
        i = pl.program_id(1)

        @pl.when(i == 0)
        def _():
            acc_ref[...] = jnp.zeros_like(acc_ref)

        d = _abs_diff_f32(x_ref[...], y_ref[...])

        def accumulate(v):
            # Fold block rows onto the (8, 128) accumulator: pure VPU, no
            # per-step scalar dependency.
            acc_ref[...] += jnp.sum(v.reshape(-1, SUBLANES, LANES), axis=0)

        if not needs_mask:
            accumulate(_apply_power(d, p))
        else:
            # NOTE: the mask uses the *logical* (unclamped) block index row0;
            # for a clamped/duplicate out-of-range block every row is masked,
            # so whatever data was read is harmless.  Do not reorder.
            row0 = (s * steps_per_split + i) * block_rows
            is_tail = row0 + block_rows > rows_valid

            @pl.when(jnp.logical_not(is_tail))
            def _():
                # Full block: no masking work at all (stays DMA-bound).
                accumulate(_apply_power(d, p))

            @pl.when(is_tail)
            def _():
                row_ids = row0 + jax.lax.broadcasted_iota(
                    jnp.int32, (block_rows, LANES), 0)
                # Mask BEFORE the power so stale/undefined VMEM rows (possibly
                # Inf/NaN) never reach the pow path.
                d_masked = jnp.where(row_ids < rows_valid, d, jnp.float32(0.0))
                accumulate(_apply_power(d_masked, p))

        @pl.when(i == pl.num_programs(1) - 1)
        def _():
            # Lane-dense (1, 8, 128) partial-sum block per split.
            o_ref[...] = acc_ref[...].reshape(1, SUBLANES, LANES)

    return kernel


def _lp_partial_sum(x2, y2, p):
    """Sum of |x - y|**p over a (rows, 128) slab via a Pallas streaming kernel."""
    rows = x2.shape[0]
    itemsize = max(x2.dtype.itemsize, y2.dtype.itemsize)

    # Size blocks by bytes (~4 MiB per input block), rounded to the sublane tile.
    cap = max(SUBLANES,
              (TARGET_BLOCK_BYTES // (LANES * itemsize)) // SUBLANES * SUBLANES)
    block_rows = min(cap, (rows // SUBLANES) * SUBLANES)
    num_blocks = pl.cdiv(rows, block_rows)

    # One stream per TensorCore, but only on dual-TC chips (v7x / v4 / v5p).
    num_cores = _tensorcores_per_chip()
    num_splits = num_cores if (num_cores > 1 and num_blocks >= num_cores) else 1
    steps = pl.cdiv(num_blocks, num_splits)
    needs_mask = (num_splits * steps * block_rows) != rows

    kernel = _make_lp_loss_kernel(p, block_rows, steps, rows, needs_mask)

    partials = pl.pallas_call(
        kernel,
        out_shape=jax.ShapeDtypeStruct((num_splits, SUBLANES, LANES), jnp.float32),
        grid_spec=pltpu.PrefetchScalarGridSpec(
            num_scalar_prefetch=0,
            grid=(num_splits, steps),
            in_specs=[
                pl.BlockSpec((block_rows, LANES), lambda s, i: (s * steps + i, 0)),
                pl.BlockSpec((block_rows, LANES), lambda s, i: (s * steps + i, 0)),
            ],
            out_specs=pl.BlockSpec((1, SUBLANES, LANES), lambda s, i: (s, 0, 0)),
            scratch_shapes=[pltpu.VMEM((SUBLANES, LANES), jnp.float32)],
        ),
        compiler_params=pltpu.CompilerParams(
            dimension_semantics=("parallel", "arbitrary"),
            vmem_limit_bytes=VMEM_LIMIT_BYTES,
        ),
    )(x2, y2)

    return jnp.sum(partials, dtype=jnp.float32)


def lp_loss(X, Y, p=1.0):
    """Pallas-TPU equivalent of LPLoss(p).forward(X, Y). Returns an f32 scalar."""
    assert X.shape == Y.shape, "X and Y must have identical shapes"
    p = float(p)
    assert p > 0, "LPLoss requires p > 0"
    total_n = int(X.size)
    assert total_n > 0
    # int32 row ids inside the kernel.
    assert total_n // LANES < 2**31, "input too large for int32 row indices"

    xf = X.reshape(-1)
    yf = Y.reshape(-1)

    rows = total_n // LANES
    main_n = rows * LANES
    rem = total_n - main_n

    if rows < SUBLANES:
        # Sub-vreg input: a kernel launch is pure overhead; reduce in jnp.
        d = _abs_diff_f32(xf, yf)
        return jnp.sum(_apply_power(d, p), dtype=jnp.float32) / jnp.float32(p * total_n)

    tail_sum = jnp.float32(0.0)
    if rem:
        # <128-element remainder reduced in plain jnp — avoids padding/copying
        # the whole input.
        d = _abs_diff_f32(xf[main_n:], yf[main_n:])
        tail_sum = jnp.sum(_apply_power(d, p), dtype=jnp.float32)
        # TODO(synk): an element-masked 1-D BlockSpec would also avoid this
        # prefix slice copy taken only when total_n % 128 != 0.
        xf = xf[:main_n]
        yf = yf[:main_n]

    # Free metadata reshape (no copy) whenever total_n % 128 == 0; a partial
    # last block (rows % block_rows != 0) is masked inside the kernel.
    x2 = xf.reshape(rows, LANES)
    y2 = yf.reshape(rows, LANES)
    main_sum = _lp_partial_sum(x2, y2, p)

    # Fold 1/p and 1/N into a single final scalar.
    return (main_sum + tail_sum) / jnp.float32(p * total_n)


if __name__ == "__main__":
    key = jax.random.PRNGKey(0)
    kx, ky = jax.random.split(key)

    # NCHW, small shapes consistent with an "image difference" loss.
    X = jax.random.normal(kx, (2, 4, 16, 16), dtype=jnp.float32)
    Y = jax.random.normal(ky, (2, 4, 16, 16), dtype=jnp.float32)

    for p in (1.0, 2.0, 1.5, 0.5, 3.0):
        loss = jax.block_until_ready(lp_loss(X, Y, p=p))
        ref = jnp.mean(jnp.abs(X - Y) ** p * (1.0 / p))
        assert jnp.allclose(loss, ref, rtol=1e-4, atol=1e-6), (p, loss, ref)

    # rows % block_rows != 0 exercises the in-kernel tail-mask path (no padding).
    Xm = jax.random.normal(kx, (2, 4, 33, 16), dtype=jnp.float32)   # 4224 elems -> 33 rows
    Ym = jax.random.normal(ky, (2, 4, 33, 16), dtype=jnp.float32)
    for p in (1.0, 1.5):
        loss = jax.block_until_ready(lp_loss(Xm, Ym, p=p))
        ref = jnp.mean(jnp.abs(Xm - Ym) ** p * (1.0 / p))
        assert jnp.allclose(loss, ref, rtol=1e-4, atol=1e-6), (p, loss, ref)

    # bf16 inputs exercise the bf16 VPU abs-diff + f32 accumulate path.
    Xb = X.astype(jnp.bfloat16)
    Yb = Y.astype(jnp.bfloat16)
    loss = jax.block_until_ready(lp_loss(Xb, Yb, p=2.0))
    db = jnp.abs(Xb - Yb).astype(jnp.float32)
    ref = jnp.mean(db * db) * 0.5
    assert jnp.allclose(loss, ref, rtol=1e-3, atol=1e-6), (loss, ref)

    # Odd (non-128-aligned) size exercises the jnp remainder / small-input path.
    Xo = jax.random.normal(kx, (2, 3, 7, 5), dtype=jnp.float32)
    Yo = jax.random.normal(ky, (2, 3, 7, 5), dtype=jnp.float32)
    loss = jax.block_until_ready(lp_loss(Xo, Yo, p=1.0))
    ref = jnp.mean(jnp.abs(Xo - Yo))
    assert jnp.allclose(loss, ref, rtol=1e-4, atol=1e-6), (loss, ref)

    print("KERNEL_OK")
</pallas_src>

<mosaic_0001>
module attributes {stable_mosaic.version = 11 : i64} {
  func.func @kernel(%arg0: i32, %arg1: i32, %arg2: memref<16x128xf32, #tpu.memory_space<vmem>>, %arg3: memref<16x128xf32, #tpu.memory_space<vmem>>, %arg4: memref<1x8x128xf32, #tpu.memory_space<vmem>>, %arg5: memref<8x128xf32, #tpu.memory_space<vmem>>) attributes {dimension_semantics = [#tpu.dimension_semantics<parallel>, #tpu.dimension_semantics<arbitrary>], iteration_bounds = array<i64: 1, 1>, scalar_prefetch = 0 : i64, scratch_operands = 1 : i64, tpu.core_type = #tpu.core_type<tc>, window_params = [{transform_indices = @transform_0, window_bounds = array<i64: 16, 128>}, {transform_indices = @transform_1, window_bounds = array<i64: 16, 128>}, {transform_indices = @transform_2, window_bounds = array<i64: 1, 8, 128>}]} {
    %c0_i32 = arith.constant 0 : i32
    %0 = arith.cmpi eq, %arg1, %c0_i32 : i32
    %1 = arith.extui %0 : i1 to i32
    %c0_i32_0 = arith.constant 0 : i32
    %2 = arith.cmpi ne, %1, %c0_i32_0 : i32
    scf.if %2 {
      %cst_10 = arith.constant 0.000000e+00 : f32
      %15 = vector.broadcast %cst_10 : f32 to vector<8x128xf32>
      %c0_11 = arith.constant 0 : index
      %c0_12 = arith.constant 0 : index
      %16 = vector.load %arg5[%c0_11, %c0_12] : memref<8x128xf32, #tpu.memory_space<vmem>>, vector<8x128xf32>
      tpu.vector_store %arg5[%c0_11, %c0_12], %15 {strides = array<i32>} : memref<8x128xf32, #tpu.memory_space<vmem>>, vector<8x128xf32>,
    } else {
    }
    %c0 = arith.constant 0 : index
    %c0_1 = arith.constant 0 : index
    %3 = vector.load %arg2[%c0, %c0_1] : memref<16x128xf32, #tpu.memory_space<vmem>>, vector<16x128xf32>
    %c0_2 = arith.constant 0 : index
    %c0_3 = arith.constant 0 : index
    %4 = vector.load %arg3[%c0_2, %c0_3] : memref<16x128xf32, #tpu.memory_space<vmem>>, vector<16x128xf32>
    %5 = arith.subf %3, %4 : vector<16x128xf32>
    %6 = math.absf %5 : vector<16x128xf32>
    %c0_4 = arith.constant 0 : index
    %c0_5 = arith.constant 0 : index
    %7 = vector.load %arg5[%c0_4, %c0_5] : memref<8x128xf32, #tpu.memory_space<vmem>>, vector<8x128xf32>
    %8 = vector.shape_cast %6 : vector<16x128xf32> to vector<2x8x128xf32>
    %cst = arith.constant dense<0.000000e+00> : vector<8x128xf32>
    %9 = vector.multi_reduction <add>, %8, %cst [0] : vector<2x8x128xf32> to vector<8x128xf32>
    %10 = arith.addf %7, %9 : vector<8x128xf32>
    %c0_6 = arith.constant 0 : index
    %c0_7 = arith.constant 0 : index
    %11 = vector.load %arg5[%c0_6, %c0_7] : memref<8x128xf32, #tpu.memory_space<vmem>>, vector<8x128xf32>
    tpu.vector_store %arg5[%c0_6, %c0_7], %10 {strides = array<i32>} : memref<8x128xf32, #tpu.memory_space<vmem>>, vector<8x128xf32>,
    %c0_i32_8 = arith.constant 0 : i32
    %12 = arith.cmpi eq, %arg1, %c0_i32_8 : i32
    %13 = arith.extui %12 : i1 to i32
    %c0_i32_9 = arith.constant 0 : i32
    %14 = arith.cmpi ne, %13, %c0_i32_9 : i32
    scf.if %14 {
      %c0_10 = arith.constant 0 : index
      %c0_11 = arith.constant 0 : index
      %15 = vector.load %arg5[%c0_10, %c0_11] : memref<8x128xf32, #tpu.memory_space<vmem>>, vector<8x128xf32>
      %16 = vector.shape_cast %15 : vector<8x128xf32> to vector<1x8x128xf32>
      %c0_12 = arith.constant 0 : index
      %c0_13 = arith.constant 0 : index
      %c0_14 = arith.constant 0 : index
      %17 = vector.load %arg4[%c0_12, %c0_13, %c0_14] : memref<1x8x128xf32, #tpu.memory_space<vmem>>, vector<1x8x128xf32>
      tpu.vector_store %arg4[%c0_12, %c0_13, %c0_14], %16 {strides = array<i32>} : memref<1x8x128xf32, #tpu.memory_space<vmem>>, vector<1x8x128xf32>,
    } else {
    }
    return
  }
  func.func @transform_0(%arg0: i32, %arg1: i32) -> (i32, i32) {
    %c1_i32 = arith.constant 1 : i32
    %0 = arith.muli %arg0, %c1_i32 : i32
    %1 = arith.addi %0, %arg1 : i32
    %c0_i32 = arith.constant 0 : i32
    %c0_i32_0 = arith.constant 0 : i32
    return %1, %c0_i32 : i32, i32
  }
  func.func @transform_1(%arg0: i32, %arg1: i32) -> (i32, i32) {
    %c1_i32 = arith.constant 1 : i32
    %0 = arith.muli %arg0, %c1_i32 : i32
    %1 = arith.addi %0, %arg1 : i32
    %c0_i32 = arith.constant 0 : i32
    %c0_i32_0 = arith.constant 0 : i32
    return %1, %c0_i32 : i32, i32
  }
  func.func @transform_2(%arg0: i32, %arg1: i32) -> (i32, i32, i32) {
    %c0_i32 = arith.constant 0 : i32
    %c0_i32_0 = arith.constant 0 : i32
    %c0_i32_1 = arith.constant 0 : i32
    return %arg0, %c0_i32, %c0_i32_0 : i32, i32, i32
  }
}

</mosaic_0001>

<llo_original>
// kernel: tpu_custom_call.1
$region0: #{tpu_custom_call.1}
  #allocation0 [shape = 'u32[]', space=smem, size = 0x4, offset = 0x4, fixed_abs, tag = 'smem constant byte address 0x4 - core index']
  #allocation1 [shape = 'u32[144,128]{1,0:T(1,128)}', space=vmem, size = 0x12000, scoped, tag = 'internal scratch']
  #allocation2 [shape = 'f32[8,128]{1,0:T(8,128)}', space=vmem, size = 0x1000, scoped, tag = 'scratch operand']
  %s0 = inlined_call_operand.hbm [shape: f32[16,128], index: 0, kind: input, shape index: {}]
  %s1 = inlined_call_operand.hbm [shape: f32[16,128], index: 1, kind: input, shape index: {}]
  %s2 = inlined_call_operand.hbm [shape: f32[1,8,128], index: 2, kind: output, shape index: {}]
  %s3 = sld [smem:[#allocation0]]
  $region34: #{tpu_custom_call.1} parent=0
    _
  %s5 = ssub.s32 1, %s3
  %s6 = scalar_select 0, %s5, %s3
  $region1: #{tpu_custom_call.1} parent=0
    #allocation3 [shape = 'u8[8192]{0}', space=vmem, size = 0x2000, scoped, tag = 'input window, operand 0, single buffered']
    #allocation4 [shape = 's32[1]{0}', space=sflag, size = 0x4, scoped, tag = 'scoped memory for tpu_custom_call.1']
    #allocation5 [shape = 's32[1]{0}', space=sflag, size = 0x4, scoped, tag = 'scoped memory for tpu_custom_call.1']
    #allocation6 [shape = 'u8[8192]{0}', space=vmem, size = 0x2000, scoped, tag = 'input window, operand 1, single buffered']
    #allocation7 [shape = 's32[1]{0}', space=sflag, size = 0x4, scoped, tag = 'scoped memory for tpu_custom_call.1']
    #allocation8 [shape = 'u8[4096]{0}', space=vmem, size = 0x1000, scoped, tag = 'output window, operand 0, single buffered']
    %7 = vsyncpa [#allocation4], 0
    %8 = vsyncpa [#allocation7], 0
    %9 = vsyncpa [#allocation5], 0
    // Predicated region
    $region2: #{tpu_custom_call.1} parent=1 // pred_check
      _
    $region3: #{tpu_custom_call.1} parent=1 // pred_check_branch
      %11 = sbr.rel (0) target = $region5
    $region4: #{tpu_custom_call.1} parent=1 // pred_region
      %s12 = sadd.s32 0, 0
      %s13 = smul.u32 2, %s12
      %s15 = ssub.s32 256, 256
      %16 = vsyncadd [#allocation4], %s15
      %s17 = smul.addr %s13, 128
      %s18 = scalar_lea.hbm %s0, %s17
      %s19 = sshll.u32 [#allocation3], 4
      %s20 = int_to_ptr.vmem [resolvable:$true] %s19
      %25 = dma.hbm_to_vmem [thread:$0]  %s18, 256, %s20, [#allocation4], 128, 128, 8
    $region5: #{tpu_custom_call.1} parent=1 // pred_fallthru
      _
    // Predicated region
    $region6: #{tpu_custom_call.1} parent=1 // pred_check
      _
    $region7: #{tpu_custom_call.1} parent=1 // pred_check_branch
      %27 = sbr.rel (0) target = $region9
    $region8: #{tpu_custom_call.1} parent=1 // pred_region
      %s28 = sadd.s32 0, 0
      %s29 = smul.u32 2, %s28
      %s31 = ssub.s32 256, 256
      %32 = vsyncadd [#allocation7], %s31
      %s33 = smul.addr %s29, 128
      %s34 = scalar_lea.hbm %s1, %s33
      %s35 = sshll.u32 [#allocation6], 4
      %s36 = int_to_ptr.vmem [resolvable:$true] %s35
      %41 = dma.hbm_to_vmem [thread:$0]  %s34, 256, %s36, [#allocation7], 128, 128, 8
    $region9: #{tpu_custom_call.1} parent=1 // pred_fallthru
      _
    // Predicated region
    $region10: #{tpu_custom_call.1} parent=1 // pred_check
      _
    $region11: #{tpu_custom_call.1} parent=1 // pred_check_branch
      %43 = sbr.rel (0) target = $region13
    $region12: #{tpu_custom_call.1} parent=1 // pred_region
      %44 = dma.done [#allocation4], 256
    $region13: #{tpu_custom_call.1} parent=1 // pred_fallthru
      _
    // Predicated region
    $region14: #{tpu_custom_call.1} parent=1 // pred_check
      _
    $region15: #{tpu_custom_call.1} parent=1 // pred_check_branch
      %46 = sbr.rel (0) target = $region17
    $region16: #{tpu_custom_call.1} parent=1 // pred_region
      %47 = dma.done [#allocation7], 256
    $region17: #{tpu_custom_call.1} parent=1 // pred_fallthru
      _
    %s48 = sadd.s32 0, 0
    %s49 = smul.u32 2, %s48
    %s50 = sadd.s32 0, 0
    %s51 = smul.u32 2, %s50
    %p52 = scmp.eq.s32.totalorder 0, 0
    // Predicated region
    $region18: #{tpu_custom_call.1} parent=1 // pred_check
      %p53 = pneg %p52
    $region19: #{tpu_custom_call.1} parent=1 // pred_check_branch
      %55 = sbr.rel (%p53) target = $region21
    $region20: #{tpu_custom_call.1} parent=1 // pred_region
      %56 = vst [vmem:[#allocation2] sm:$0xff] 0.0
    $region21: #{tpu_custom_call.1} parent=1 // pred_fallthru
      _
    %v57 = vld [vmem:[#allocation3] sm:$0xff]
    %v58 = vld [vmem:[#allocation3 + $0x8] sm:$0xff]
    %v59 = vld [vmem:[#allocation6] sm:$0xff]
    %v60 = vld [vmem:[#allocation6 + $0x8] sm:$0xff]
    %v61 = vsub.f32 %v57, %v59
    %v62 = vsub.f32 %v58, %v60
    %v63 = vand.u32 2147483647, %v61
    %v64 = vand.u32 2147483647, %v62
    %v65 = vld [vmem:[#allocation2] sm:$0xff]
    %v66 = vadd.f32 %v63, %v64
    %v67 = vadd.f32 %v65, %v66
    %68 = vst [vmem:[#allocation2] sm:$0xff] %v67
    // Predicated region
    $region22: #{tpu_custom_call.1} parent=1 // pred_check
      %p69 = pneg %p52
    $region23: #{tpu_custom_call.1} parent=1 // pred_check_branch
      %71 = sbr.rel (%p69) target = $region25
    $region24: #{tpu_custom_call.1} parent=1 // pred_region
      %v72 = vld [vmem:[#allocation2] sm:$0xff]
      %73 = vst [vmem:[#allocation8] sm:$0xff] %v72
    $region25: #{tpu_custom_call.1} parent=1 // pred_fallthru
      _
    // Predicated region
    $region26: #{tpu_custom_call.1} parent=1 // pred_check
      _
    $region27: #{tpu_custom_call.1} parent=1 // pred_check_branch
      %75 = sbr.rel (0) target = $region29
    $region28: #{tpu_custom_call.1} parent=1 // pred_region
      %s77 = ssub.s32 128, 128
      %78 = vsyncadd [#allocation5], %s77
      %s80 = sshll.u32 [#allocation8], 4
      %s81 = int_to_ptr.vmem [resolvable:$true] %s80
      %83 = dma.vmem_to_hbm [thread:$0]  %s81, 128, %s2, [#allocation5]
    $region29: #{tpu_custom_call.1} parent=1 // pred_fallthru
      _
    // Predicated region
    $region30: #{tpu_custom_call.1} parent=1 // pred_check
      _
    $region31: #{tpu_custom_call.1} parent=1 // pred_check_branch
      %85 = sbr.rel (0) target = $region33
    $region32: #{tpu_custom_call.1} parent=1 // pred_region
      %86 = dma.done [#allocation5], 128
    $region33: #{tpu_custom_call.1} parent=1 // pred_fallthru
      _
    %87 = vsyncpa [#allocation4], 1
    %88 = vsyncpa [#allocation7], 1
    %89 = vsyncpa [#allocation5], 1

</llo_original>
